<compile_context>
chip_gen: v7x
topology: tpu7x:2x2x1
jax: 0.10.0
libtpu: 0.0.40
codegen_flags: <defaults>
</compile_context>

<pallas_src>
import jax
import jax.numpy as jnp
import numpy as np
from jax.experimental import pallas as pl
from jax.experimental.pallas import tpu as pltpu


def _num_tensorcores_per_chip():
    """v7x has 2 TensorCores per chip; v5e/v6e have 1."""
    try:
        kind = (jax.devices()[0].device_kind or "").lower()
        if "v7" in kind:
            return 2
    except Exception:
        pass
    return 1


def _make_kernel(Bt, H, W, Cin, Cout, K, Wp):
    """Kernel closure over static shape parameters."""
    WCout = W * Cout

    def kernel(x_ref, wf_ref, cb_ref, pool_ref, head_ref, fb_ref, out_ref):
        # x_ref:    [Bt, Hp, Wp*Cin]    bf16 padded NHWC input (lanes = Wp*Cin)
        # wf_ref:   [K, Wp*Cin, W*Cout] bf16 per-ki block-banded conv weights
        # cb_ref:   [1, W*Cout]         f32 conv bias tiled over the W groups
        # pool_ref: [Bt, Bt*H]          f32 block-ones per-sample row-sum matrix
        # head_ref: [W*Cout, NC]        f32 (fc_w.T / HW) tiled over W (pool fused)
        # fb_ref:   [1, NC]             f32 classifier bias
        # out_ref:  [1, Bt, NC]
        xslabs = [x_ref[b] for b in range(Bt)]            # each [Hp, Wp*Cin] bf16
        acc = jnp.zeros((Bt * H, WCout), jnp.float32)
        # Straight chain of accumulated dots (MRB-friendly on v7x); bias/ReLU
        # are applied once after the loop.
        for ki in range(K):
            if Bt == 1:
                xs = xslabs[0][ki:ki + H, :]               # [H, Wp*Cin]
            else:
                xs = jnp.concatenate(
                    [xv[ki:ki + H, :] for xv in xslabs], axis=0)  # [Bt*H, Wp*Cin]
            acc = acc + jnp.dot(xs, wf_ref[ki],
                                preferred_element_type=jnp.float32)
        conv = jnp.maximum(acc + cb_ref[...], 0.0)         # [Bt*H, W*Cout] f32
        # Per-sample row sum via an MXU ones-matmul (keeps the reduce off the XLU).
        pooled = jnp.dot(pool_ref[...], conv,
                         preferred_element_type=jnp.float32)       # [Bt, W*Cout]
        # Fused (column-average * fc_w.T) head + bias.
        logits = jnp.dot(pooled, head_ref[...],
                         preferred_element_type=jnp.float32) + fb_ref[...]
        # NC=10 < 128 lanes -> masked store; negligible (80 B) at this size.
        out_ref[0] = logits.astype(out_ref.dtype)

    return kernel


def pack_params(conv_w, conv_b, fc_w, fc_b, H, W):
    """One-time weight repacking, hoisted out of the per-call jitted path."""
    conv_w = np.asarray(conv_w, np.float32)   # [Cout, Cin, K, K]
    conv_b = np.asarray(conv_b, np.float32)   # [Cout]
    fc_w = np.asarray(fc_w, np.float32)       # [NC, Cout]
    fc_b = np.asarray(fc_b, np.float32)       # [NC]
    Cout, Cin, K, _ = conv_w.shape
    NC = fc_w.shape[0]
    pad = K // 2
    Wp = W + 2 * pad

    # Fold the horizontal taps (kj) into a per-ki block-banded RHS:
    #   wfold[ki, jp*Cin + c, J*Cout + o] = conv_w[o, c, ki, jp - J]  if 0 <= jp-J < K
    jp = np.arange(Wp)[:, None, None]
    J = np.arange(W)[None, :, None]
    kj = np.arange(K)[None, None, :]
    ind = (jp == J + kj).astype(np.float32)                 # [Wp, W, K]
    wkt = np.transpose(conv_w, (2, 3, 1, 0))                # [ki, kj, Cin, Cout]
    wfold = np.einsum('pJq,iqco->ipcJo', ind, wkt).reshape(K, Wp * Cin, W * Cout)

    cbt = np.tile(conv_b, W).reshape(1, W * Cout)           # bias per (J, o) lane
    head = np.tile(fc_w.T, (W, 1)) / float(H * W)           # absorbs the avg pool
    fb = fc_b.reshape(1, NC)
    return dict(
        wfold=jnp.asarray(wfold, jnp.bfloat16),             # bf16 MXU operand
        cbt=jnp.asarray(cbt, jnp.float32),
        head=jnp.asarray(head, jnp.float32),
        fb=jnp.asarray(fb, jnp.float32),
        dims=(Cout, Cin, K, NC),
    )


def make_combined_forward(conv_w, conv_b, fc_w, fc_b, H, W):
    packed = pack_params(conv_w, conv_b, fc_w, fc_b, H, W)
    Cout, Cin, K, NC = packed["dims"]
    pad = K // 2
    Hp, Wp = H + 2 * pad, W + 2 * pad
    num_tc = _num_tensorcores_per_chip()
    wfold, cbt, head, fb = (packed["wfold"], packed["cbt"],
                            packed["head"], packed["fb"])

    @jax.jit
    def forward(x_nchw):
        B = x_nchw.shape[0]
        # Glue: NCHW -> padded NHWC, flatten (Wp, Cin) onto the lane axis, bf16
        # for the MXU feed (elementwise math stays f32 inside the kernel).
        x = jnp.transpose(x_nchw, (0, 2, 3, 1)).astype(jnp.float32)
        xp = jnp.pad(x, ((0, 0), (pad, pad), (pad, pad), (0, 0)))
        x3 = xp.reshape(B, Hp, Wp * Cin).astype(jnp.bfloat16)

        # Split the batch over the grid only where it buys a second TensorCore
        # (v7x); extra serial grid steps on 1-TC chips are pure overhead.
        NT = num_tc if (num_tc > 1 and B >= num_tc and B % num_tc == 0) else 1
        Bt = B // NT

        # Block-ones matrix summing each sample's H rows (pooling on the MXU).
        pool_mat = jnp.asarray(
            np.kron(np.eye(Bt, dtype=np.float32), np.ones((1, H), np.float32)))

        kernel = _make_kernel(Bt, H, W, Cin, Cout, K, Wp)
        out = pl.pallas_call(
            kernel,
            out_shape=jax.ShapeDtypeStruct((NT, Bt, NC), jnp.float32),
            grid=(NT,),
            in_specs=[
                pl.BlockSpec((Bt, Hp, Wp * Cin), lambda t: (t, 0, 0)),   # batch tile
                pl.BlockSpec((K, Wp * Cin, W * Cout), lambda t: (0, 0, 0)),
                pl.BlockSpec((1, W * Cout), lambda t: (0, 0)),
                pl.BlockSpec((Bt, Bt * H), lambda t: (0, 0)),
                pl.BlockSpec((W * Cout, NC), lambda t: (0, 0)),
                pl.BlockSpec((1, NC), lambda t: (0, 0)),
            ],
            out_specs=pl.BlockSpec((1, Bt, NC), lambda t: (t, 0, 0)),
            compiler_params=pltpu.CompilerParams(
                dimension_semantics=("parallel",)),
        )(x3, wfold, cbt, pool_mat, head, fb)
        return out.reshape(B, NC)

    return forward


def reference_forward(x_nchw, conv_w, conv_b, fc_w, fc_b):
    """Pure-JAX reference matching PyTorch semantics (no_grad forward)."""
    out = jax.lax.conv_general_dilated(
        x_nchw.astype(jnp.float32), conv_w.astype(jnp.float32),
        window_strides=(1, 1), padding="SAME",
        dimension_numbers=("NCHW", "OIHW", "NCHW"))
    out = jnp.maximum(out + conv_b[None, :, None, None], 0.0)
    feats = jnp.mean(out, axis=(2, 3))                                 # [B, Cout]
    return feats @ fc_w.T + fc_b


if __name__ == "__main__":
    # Small, deterministic synthetic shapes.
    B, Cin, H, W = 2, 4, 16, 16
    Cout, K, NC = 8, 3, 10

    key = jax.random.PRNGKey(0)
    kx, kcw, kcb, kfw, kfb = jax.random.split(key, 5)
    x = jax.random.normal(kx, (B, Cin, H, W), dtype=jnp.float32)
    conv_w = jax.random.normal(kcw, (Cout, Cin, K, K), dtype=jnp.float32) * 0.1
    conv_b = jax.random.normal(kcb, (Cout,), dtype=jnp.float32) * 0.1
    fc_w = jax.random.normal(kfw, (NC, Cout), dtype=jnp.float32) * 0.1
    fc_b = jax.random.normal(kfb, (NC,), dtype=jnp.float32) * 0.1

    forward = make_combined_forward(conv_w, conv_b, fc_w, fc_b, H, W)
    out = jax.block_until_ready(forward(x))

    ref = reference_forward(x, conv_w, conv_b, fc_w, fc_b)
    # bf16 MXU operands (f32 accumulation/elementwise) -> looser tolerance.
    np.testing.assert_allclose(np.asarray(out), np.asarray(ref),
                               rtol=2e-2, atol=2e-2)
    print("KERNEL_OK")
</pallas_src>

<mosaic_0001>
module attributes {stable_mosaic.version = 11 : i64} {
  func.func @kernel(%arg0: i32, %arg1: memref<2x18x72xbf16, #tpu.memory_space<vmem>>, %arg2: memref<3x72x128xbf16, #tpu.memory_space<vmem>>, %arg3: memref<1x128xf32, #tpu.memory_space<vmem>>, %arg4: memref<2x32xf32, #tpu.memory_space<vmem>>, %arg5: memref<128x10xf32, #tpu.memory_space<vmem>>, %arg6: memref<1x10xf32, #tpu.memory_space<vmem>>, %arg7: memref<1x2x10xf32, #tpu.memory_space<vmem>>) attributes {dimension_semantics = [#tpu.dimension_semantics<parallel>], iteration_bounds = array<i64: 1>, scalar_prefetch = 0 : i64, scratch_operands = 0 : i64, tpu.core_type = #tpu.core_type<tc>, window_params = [{transform_indices = @transform_0, window_bounds = array<i64: 2, 18, 72>}, {pipeline_mode = #tpu.pipeline_mode<synchronous>, transform_indices = @transform_1, window_bounds = array<i64: 3, 72, 128>}, {pipeline_mode = #tpu.pipeline_mode<synchronous>, transform_indices = @transform_2, window_bounds = array<i64: 1, 128>}, {pipeline_mode = #tpu.pipeline_mode<synchronous>, transform_indices = @transform_3, window_bounds = array<i64: 2, 32>}, {pipeline_mode = #tpu.pipeline_mode<synchronous>, transform_indices = @transform_4, window_bounds = array<i64: 128, 10>}, {pipeline_mode = #tpu.pipeline_mode<synchronous>, transform_indices = @transform_5, window_bounds = array<i64: 1, 10>}, {transform_indices = @transform_6, window_bounds = array<i64: 1, 2, 10>}]} {
    %c0 = arith.constant 0 : index
    %c0_0 = arith.constant 0 : index
    %c0_1 = arith.constant 0 : index
    %0 = vector.load %arg1[%c0, %c0_0, %c0_1] : memref<2x18x72xbf16, #tpu.memory_space<vmem>>, vector<1x18x72xbf16>
    %1 = vector.shape_cast %0 : vector<1x18x72xbf16> to vector<18x72xbf16>
    %c1 = arith.constant 1 : index
    %c0_2 = arith.constant 0 : index
    %c0_3 = arith.constant 0 : index
    %2 = vector.load %arg1[%c1, %c0_2, %c0_3] : memref<2x18x72xbf16, #tpu.memory_space<vmem>>, vector<1x18x72xbf16>
    %3 = vector.shape_cast %2 : vector<1x18x72xbf16> to vector<18x72xbf16>
    %cst = arith.constant 0.000000e+00 : f32
    %4 = vector.broadcast %cst : f32 to vector<32x128xf32>
    %5 = vector.extract_strided_slice %1 {offsets = [0, 0], sizes = [16, 72], strides = [1, 1]} : vector<18x72xbf16> to vector<16x72xbf16>
    %6 = vector.extract_strided_slice %3 {offsets = [0, 0], sizes = [16, 72], strides = [1, 1]} : vector<18x72xbf16> to vector<16x72xbf16>
    %7 = tpu.concatenate %5, %6 in 0 : vector<16x72xbf16>, vector<16x72xbf16> -> vector<32x72xbf16>
    %c0_4 = arith.constant 0 : index
    %c0_5 = arith.constant 0 : index
    %c0_6 = arith.constant 0 : index
    %8 = vector.load %arg2[%c0_4, %c0_5, %c0_6] : memref<3x72x128xbf16, #tpu.memory_space<vmem>>, vector<1x72x128xbf16>
    %9 = vector.shape_cast %8 : vector<1x72x128xbf16> to vector<72x128xbf16>
    %cst_7 = arith.constant dense<0.000000e+00> : vector<32x128xf32>
    %10 = tpu.matmul %7, %9, %cst_7 {dimension_numbers = #tpu.dot_dimension_numbers<[1], [0], [0], [1], [0, 0, 1, 1], [], []>} : vector<32x72xbf16>, vector<72x128xbf16>, vector<32x128xf32> -> vector<32x128xf32>
    %11 = arith.addf %4, %10 : vector<32x128xf32>
    %12 = vector.extract_strided_slice %1 {offsets = [1, 0], sizes = [16, 72], strides = [1, 1]} : vector<18x72xbf16> to vector<16x72xbf16>
    %13 = vector.extract_strided_slice %3 {offsets = [1, 0], sizes = [16, 72], strides = [1, 1]} : vector<18x72xbf16> to vector<16x72xbf16>
    %14 = tpu.concatenate %12, %13 in 0 : vector<16x72xbf16>, vector<16x72xbf16> -> vector<32x72xbf16>
    %c1_8 = arith.constant 1 : index
    %c0_9 = arith.constant 0 : index
    %c0_10 = arith.constant 0 : index
    %15 = vector.load %arg2[%c1_8, %c0_9, %c0_10] : memref<3x72x128xbf16, #tpu.memory_space<vmem>>, vector<1x72x128xbf16>
    %16 = vector.shape_cast %15 : vector<1x72x128xbf16> to vector<72x128xbf16>
    %cst_11 = arith.constant dense<0.000000e+00> : vector<32x128xf32>
    %17 = tpu.matmul %14, %16, %cst_11 {dimension_numbers = #tpu.dot_dimension_numbers<[1], [0], [0], [1], [0, 0, 1, 1], [], []>} : vector<32x72xbf16>, vector<72x128xbf16>, vector<32x128xf32> -> vector<32x128xf32>
    %18 = arith.addf %11, %17 : vector<32x128xf32>
    %19 = vector.extract_strided_slice %1 {offsets = [2, 0], sizes = [16, 72], strides = [1, 1]} : vector<18x72xbf16> to vector<16x72xbf16>
    %20 = vector.extract_strided_slice %3 {offsets = [2, 0], sizes = [16, 72], strides = [1, 1]} : vector<18x72xbf16> to vector<16x72xbf16>
    %21 = tpu.concatenate %19, %20 in 0 : vector<16x72xbf16>, vector<16x72xbf16> -> vector<32x72xbf16>
    %c2 = arith.constant 2 : index
    %c0_12 = arith.constant 0 : index
    %c0_13 = arith.constant 0 : index
    %22 = vector.load %arg2[%c2, %c0_12, %c0_13] : memref<3x72x128xbf16, #tpu.memory_space<vmem>>, vector<1x72x128xbf16>
    %23 = vector.shape_cast %22 : vector<1x72x128xbf16> to vector<72x128xbf16>
    %cst_14 = arith.constant dense<0.000000e+00> : vector<32x128xf32>
    %24 = tpu.matmul %21, %23, %cst_14 {dimension_numbers = #tpu.dot_dimension_numbers<[1], [0], [0], [1], [0, 0, 1, 1], [], []>} : vector<32x72xbf16>, vector<72x128xbf16>, vector<32x128xf32> -> vector<32x128xf32>
    %25 = arith.addf %18, %24 : vector<32x128xf32>
    %c0_15 = arith.constant 0 : index
    %c0_16 = arith.constant 0 : index
    %26 = vector.load %arg3[%c0_15, %c0_16] : memref<1x128xf32, #tpu.memory_space<vmem>>, vector<1x128xf32>
    %27 = vector.broadcast %26 : vector<1x128xf32> to vector<32x128xf32>
    %28 = arith.addf %25, %27 : vector<32x128xf32>
    %cst_17 = arith.constant 0.000000e+00 : f32
    %29 = vector.broadcast %cst_17 : f32 to vector<32x128xf32>
    %30 = arith.maximumf %28, %29 : vector<32x128xf32>
    %c0_18 = arith.constant 0 : index
    %c0_19 = arith.constant 0 : index
    %31 = vector.load %arg4[%c0_18, %c0_19] : memref<2x32xf32, #tpu.memory_space<vmem>>, vector<2x32xf32>
    %cst_20 = arith.constant dense<0.000000e+00> : vector<2x128xf32>
    %32 = tpu.matmul %31, %30, %cst_20 {dimension_numbers = #tpu.dot_dimension_numbers<[1], [0], [0], [1], [0, 0, 1, 1], [], []>} : vector<2x32xf32>, vector<32x128xf32>, vector<2x128xf32> -> vector<2x128xf32>
    %c0_21 = arith.constant 0 : index
    %c0_22 = arith.constant 0 : index
    %33 = vector.load %arg5[%c0_21, %c0_22] : memref<128x10xf32, #tpu.memory_space<vmem>>, vector<128x10xf32>
    %cst_23 = arith.constant dense<0.000000e+00> : vector<2x10xf32>
    %34 = tpu.matmul %32, %33, %cst_23 {dimension_numbers = #tpu.dot_dimension_numbers<[1], [0], [0], [1], [0, 0, 1, 1], [], []>} : vector<2x128xf32>, vector<128x10xf32>, vector<2x10xf32> -> vector<2x10xf32>
    %c0_24 = arith.constant 0 : index
    %c0_25 = arith.constant 0 : index
    %35 = vector.load %arg6[%c0_24, %c0_25] : memref<1x10xf32, #tpu.memory_space<vmem>>, vector<1x10xf32>
    %36 = vector.broadcast %35 : vector<1x10xf32> to vector<2x10xf32>
    %37 = arith.addf %34, %36 : vector<2x10xf32>
    %c0_26 = arith.constant 0 : index
    %c0_27 = arith.constant 0 : index
    %c0_28 = arith.constant 0 : index
    %38 = vector.load %arg7[%c0_26, %c0_27, %c0_28] : memref<1x2x10xf32, #tpu.memory_space<vmem>>, vector<1x2x10xf32>
    %39 = vector.shape_cast %38 : vector<1x2x10xf32> to vector<2x10xf32>
    %40 = vector.shape_cast %37 : vector<2x10xf32> to vector<1x2x10xf32>
    tpu.vector_store %arg7[%c0_26, %c0_27, %c0_28], %40 {strides = array<i32>} : memref<1x2x10xf32, #tpu.memory_space<vmem>>, vector<1x2x10xf32>,
    return
  }
  func.func @transform_0(%arg0: i32) -> (i32, i32, i32) {
    %c0_i32 = arith.constant 0 : i32
    %c0_i32_0 = arith.constant 0 : i32
    %c0_i32_1 = arith.constant 0 : i32
    return %arg0, %c0_i32, %c0_i32_0 : i32, i32, i32
  }
  func.func @transform_1(%arg0: i32) -> (i32, i32, i32) {
    %c0_i32 = arith.constant 0 : i32
    %c0_i32_0 = arith.constant 0 : i32
    %c0_i32_1 = arith.constant 0 : i32
    %c0_i32_2 = arith.constant 0 : i32
    return %c0_i32, %c0_i32_0, %c0_i32_1 : i32, i32, i32
  }
  func.func @transform_2(%arg0: i32) -> (i32, i32) {
    %c0_i32 = arith.constant 0 : i32
    %c0_i32_0 = arith.constant 0 : i32
    %c0_i32_1 = arith.constant 0 : i32
    return %c0_i32, %c0_i32_0 : i32, i32
  }
  func.func @transform_3(%arg0: i32) -> (i32, i32) {
    %c0_i32 = arith.constant 0 : i32
    %c0_i32_0 = arith.constant 0 : i32
    %c0_i32_1 = arith.constant 0 : i32
    return %c0_i32, %c0_i32_0 : i32, i32
  }
  func.func @transform_4(%arg0: i32) -> (i32, i32) {
    %c0_i32 = arith.constant 0 : i32
    %c0_i32_0 = arith.constant 0 : i32
    %c0_i32_1 = arith.constant 0 : i32
    return %c0_i32, %c0_i32_0 : i32, i32
  }
  func.func @transform_5(%arg0: i32) -> (i32, i32) {
    %c0_i32 = arith.constant 0 : i32
    %c0_i32_0 = arith.constant 0 : i32
    %c0_i32_1 = arith.constant 0 : i32
    return %c0_i32, %c0_i32_0 : i32, i32
  }
  func.func @transform_6(%arg0: i32) -> (i32, i32, i32) {
    %c0_i32 = arith.constant 0 : i32
    %c0_i32_0 = arith.constant 0 : i32
    %c0_i32_1 = arith.constant 0 : i32
    return %arg0, %c0_i32, %c0_i32_0 : i32, i32, i32
  }
}

</mosaic_0001>

<llo_original>
// kernel: forward.1
$region0: #{forward.1}
  #allocation0 [shape = 'u32[]', space=smem, size = 0x4, offset = 0x4, fixed_abs, tag = 'smem constant byte address 0x4 - core index']
  #allocation1 [shape = 'u32[144,128]{1,0:T(1,128)}', space=vmem, size = 0x12000, scoped, tag = 'internal scratch']
  %s0 = inlined_call_operand.vmem [shape: bf16[2,18,72], index: 0, kind: input, shape index: {}]
  %s1 = inlined_call_operand.vmem [shape: bf16[3,72,128], index: 1, kind: input, shape index: {}]
  %s2 = inlined_call_operand.vmem [shape: f32[1,128], index: 2, kind: input, shape index: {}]
  %s3 = inlined_call_operand.vmem [shape: f32[2,32], index: 3, kind: input, shape index: {}]
  %s4 = inlined_call_operand.vmem [shape: f32[128,10], index: 4, kind: input, shape index: {}]
  %s5 = inlined_call_operand.vmem [shape: f32[1,10], index: 5, kind: input, shape index: {}]
  %s6 = inlined_call_operand.hbm [shape: f32[1,2,10], index: 6, kind: output, shape index: {}]
  %s7 = sld [smem:[#allocation0]]
  $region34: #{forward.1} parent=0
    _
  %s9 = ssub.s32 1, %s7
  %s10 = scalar_select 0, %s9, %s7
  $region1: #{forward.1} parent=0
    #allocation2 [shape = 'u8[1024]{0}', space=vmem, size = 0x400, scoped, tag = 'output window, operand 0, single buffered']
    #allocation3 [shape = 's32[1]{0}', space=sflag, size = 0x4, scoped, tag = 'scoped memory for forward.1']
    %11 = vsyncpa [#allocation3], 0
    // Predicated region
    $region2: #{forward.1} parent=1 // pred_check
      _
    $region3: #{forward.1} parent=1 // pred_check_branch
      %13 = sbr.rel (0) target = $region5
    $region4: #{forward.1} parent=1 // pred_region
      _
    $region5: #{forward.1} parent=1 // pred_fallthru
      _
    // Predicated region
    $region6: #{forward.1} parent=1 // pred_check
      _
    $region7: #{forward.1} parent=1 // pred_check_branch
      %15 = sbr.rel (0) target = $region9
    $region8: #{forward.1} parent=1 // pred_region
      _
    $region9: #{forward.1} parent=1 // pred_fallthru
      _
    // Predicated region
    $region10: #{forward.1} parent=1 // pred_check
      _
    $region11: #{forward.1} parent=1 // pred_check_branch
      %17 = sbr.rel (0) target = $region13
    $region12: #{forward.1} parent=1 // pred_region
      _
    $region13: #{forward.1} parent=1 // pred_fallthru
      _
    // Predicated region
    $region14: #{forward.1} parent=1 // pred_check
      _
    $region15: #{forward.1} parent=1 // pred_check_branch
      %19 = sbr.rel (0) target = $region17
    $region16: #{forward.1} parent=1 // pred_region
      _
    $region17: #{forward.1} parent=1 // pred_fallthru
      _
    // Predicated region
    $region18: #{forward.1} parent=1 // pred_check
      _
    $region19: #{forward.1} parent=1 // pred_check_branch
      %21 = sbr.rel (0) target = $region21
    $region20: #{forward.1} parent=1 // pred_region
      _
    $region21: #{forward.1} parent=1 // pred_fallthru
      _
    // Predicated region
    $region22: #{forward.1} parent=1 // pred_check
      _
    $region23: #{forward.1} parent=1 // pred_check_branch
      %23 = sbr.rel (0) target = $region25
    $region24: #{forward.1} parent=1 // pred_region
      _
    $region25: #{forward.1} parent=1 // pred_fallthru
      _
    %v25 = vld [vmem:[%s0] sm:$0xf]
    %v26 = vld [vmem:[%s0 + $0x4] sm:$0xf]
    %v27 = vld [vmem:[%s0 + $0x8] sm:$0x1]
    %s28 = scalar_lea.vmem %s0, 12
    %v29 = vld [vmem:[%s28] sm:$0xf]
    %v30 = vld [vmem:[%s28 + $0x4] sm:$0xf]
    %v31 = vld [vmem:[%s28 + $0x8] sm:$0x1]
    %v34 = vunpack.c.l.b16 %v25
    %v35 = vunpack.c.l.b16 %v26
    %v36 = vpack.c.b16 %v35, %v34
    %v39 = vunpack.c.l.b16 %v29
    %v40 = vunpack.c.l.b16 %v30
    %v41 = vpack.c.b16 %v40, %v39
    %v42 = vld [vmem:[%s1] sm:$0xf]
    %v43 = vld [vmem:[%s1 + $0x4] sm:$0xf]
    %v44 = vld [vmem:[%s1 + $0x8] sm:$0xf]
    %v45 = vld [vmem:[%s1 + $0xc] sm:$0xf]
    %v46 = vld [vmem:[%s1 + $0x10] sm:$0xf]
    %v47 = vld [vmem:[%s1 + $0x14] sm:$0xf]
    %v48 = vld [vmem:[%s1 + $0x18] sm:$0xf]
    %v49 = vld [vmem:[%s1 + $0x1c] sm:$0xf]
    %v50 = vld [vmem:[%s1 + $0x20] sm:$0xf]
    %v52 = vunpack.c.l.b16 %v27
    %v53 = vpack.c.b16 %v52, %v52
    %vm54 = vsmask.f32 7424
    %v56 = vshrl.u32 %v36, 16
    %v58 = vshll.u32 %v36, 16
    %v60 = vrot.slane %v58, 1
    %v61 = vor.u32 %v56, %v60
    %v63 = vshll.u32 %v53, 16
    %v65 = vrot.slane %v63, 1
    %v66 = vsel %vm54, %v61, %v65
    %v68 = vunpack.c.l.b16 %v31
    %v69 = vpack.c.b16 %v68, %v68
    %v71 = vshrl.u32 %v41, 16
    %v73 = vshll.u32 %v41, 16
    %v75 = vrot.slane %v73, 1
    %v76 = vor.u32 %v71, %v75
    %v78 = vshll.u32 %v69, 16
    %v80 = vrot.slane %v78, 1
    %v81 = vsel %vm54, %v76, %v80
    %s82 = scalar_lea.vmem %s1, 36
    %v83 = vld [vmem:[%s82] sm:$0xf]
    %v84 = vld [vmem:[%s82 + $0x4] sm:$0xf]
    %v85 = vld [vmem:[%s82 + $0x8] sm:$0xf]
    %v86 = vld [vmem:[%s82 + $0xc] sm:$0xf]
    %v87 = vld [vmem:[%s82 + $0x10] sm:$0xf]
    %v88 = vld [vmem:[%s82 + $0x14] sm:$0xf]
    %v89 = vld [vmem:[%s82 + $0x18] sm:$0xf]
    %v90 = vld [vmem:[%s82 + $0x1c] sm:$0xf]
    %v91 = vld [vmem:[%s82 + $0x20] sm:$0xf]
    %v101 = vunpack.c.l.b16 %v83
    %v102 = vunpack.c.l.b16 %v84
    %v103 = vunpack.c.l.b16 %v85
    %v104 = vunpack.c.l.b16 %v86
    %v105 = vunpack.c.l.b16 %v87
    %v106 = vunpack.c.l.b16 %v88
    %v107 = vunpack.c.l.b16 %v89
    %v108 = vunpack.c.l.b16 %v90
    %v109 = vunpack.c.l.b16 %v91
    %v110 = vpack.c.b16 %v102, %v101
    %v111 = vpack.c.b16 %v104, %v103
    %v112 = vpack.c.b16 %v106, %v105
    %v113 = vpack.c.b16 %v108, %v107
    %v114 = vpack.c.b16 %v109, %v109
    %vm119 = vcmask 588800
    %v121 = vsel %vm119, %v66, 0
    %v124 = vsel %vm119, %v81, 0
    %vm126 = vcmask 1043456
    %v128 = vsel %vm126, %v114, 0
    %130 = vmatprep.subr.bf16.mxu0 0
    %131 = vmatpush1.bf16.msra.mxu0 %v110
    %132 = vmatprep.subr.bf16.mxu0 0
    %133 = vmatpush1.bf16.msra.mxu0 %v111
    %134 = vmatprep.subr.bf16.mxu0 0
    %135 = vmatpush1.bf16.msra.mxu0 %v112
    %136 = vmatprep.subr.bf16.mxu0 0
    %137 = vmatpush1.bf16.msra.mxu0 %v113
    %138 = vmatprep.subr.bf16.mxu0 0
    %139 = vmatpush1.bf16.msra.mxu0 %v128
    %140 = vmatprep.subr.bf16.mxu0 0
    %141 = vmatpush1.bf16.msra.mxu0 0
    %142 = vmatprep.subr.bf16.mxu0 0
    %143 = vmatpush1.bf16.msra.mxu0 0
    %144 = vmatprep.subr.bf16.mxu0 0
    %145 = vmatpush1.bf16.msra.mxu0 0
    %146 = vmatprep.subr.bf16.mxu0 0
    %147 = vmatpush1.bf16.msra.mxu0 0
    %148 = vmatprep.subr.bf16.mxu0 0
    %149 = vmatpush1.bf16.msra.mxu0 0
    %150 = vmatprep.subr.bf16.mxu0 0
    %151 = vmatpush1.bf16.msra.mxu0 0
    %152 = vmatprep.subr.bf16.mxu0 0
    %153 = vmatpush1.bf16.msra.mxu0 0
    %154 = vmatprep.subr.bf16.mxu0 0
    %155 = vmatpush1.bf16.msra.mxu0 0
    %156 = vmatprep.subr.bf16.mxu0 0
    %157 = vmatpush1.bf16.msra.mxu0 0
    %158 = vmatprep.subr.bf16.mxu0 0
    %159 = vmatpush1.bf16.msra.mxu0 0
    %160 = vmatprep.subr.bf16.mxu0 0
    %161 = vmatpush1.bf16.msra.mxu0 0
    %162 = vmatprep.mubr.bf16.mxu0 0
    %163 = vmatmul.mubr.bf16.gmra.mrb[0].mxu0 %v121
    %v164 = vpop.f32.mrb[0].mxu0
    %v165 = vadd.f32 0.0, %v164
    %v166 = vpop.f32.mrb[0].mxu0
    %v167 = vpop.f32.mrb[0].mxu0
    %v168 = vadd.f32 0.0, %v167
    %v169 = vpop.f32.mrb[0].mxu0
    %170 = vmatprep.mubr.bf16.mxu0 0
    %171 = vmatmul.mubr.bf16.gmra.mrb[0].mxu0 %v124
    %v172 = vpop.f32.mrb[0].mxu0
    %v173 = vadd.f32 0.0, %v172
    %v174 = vpop.f32.mrb[0].mxu0
    %v175 = vpop.f32.mrb[0].mxu0
    %v176 = vadd.f32 0.0, %v175
    %v177 = vpop.f32.mrb[0].mxu0
    %178 = vdwg.mxu0
    %v188 = vunpack.c.l.b16 %v42
    %v189 = vunpack.c.l.b16 %v43
    %v190 = vunpack.c.l.b16 %v44
    %v191 = vunpack.c.l.b16 %v45
    %v192 = vunpack.c.l.b16 %v46
    %v193 = vunpack.c.l.b16 %v47
    %v194 = vunpack.c.l.b16 %v48
    %v195 = vunpack.c.l.b16 %v49
    %v196 = vunpack.c.l.b16 %v50
    %v197 = vpack.c.b16 %v189, %v188
    %v198 = vpack.c.b16 %v191, %v190
    %v199 = vpack.c.b16 %v193, %v192
    %v200 = vpack.c.b16 %v195, %v194
    %v201 = vpack.c.b16 %v196, %v196
    %v206 = vsel %vm119, %v36, 0
    %v208 = vsel %vm119, %v41, 0
    %v211 = vsel %vm126, %v201, 0
    %213 = vmatprep.subr.bf16.mxu0 0
    %214 = vmatpush1.bf16.msra.mxu0 %v197
    %215 = vmatprep.subr.bf16.mxu0 0
    %216 = vmatpush1.bf16.msra.mxu0 %v198
    %217 = vmatprep.subr.bf16.mxu0 0
    %218 = vmatpush1.bf16.msra.mxu0 %v199
    %219 = vmatprep.subr.bf16.mxu0 0
    %220 = vmatpush1.bf16.msra.mxu0 %v200
    %221 = vmatprep.subr.bf16.mxu0 0
    %222 = vmatpush1.bf16.msra.mxu0 %v211
    %223 = vmatprep.subr.bf16.mxu0 0
    %224 = vmatpush1.bf16.msra.mxu0 0
    %225 = vmatprep.subr.bf16.mxu0 0
    %226 = vmatpush1.bf16.msra.mxu0 0
    %227 = vmatprep.subr.bf16.mxu0 0
    %228 = vmatpush1.bf16.msra.mxu0 0
    %229 = vmatprep.subr.bf16.mxu0 0
    %230 = vmatpush1.bf16.msra.mxu0 0
    %231 = vmatprep.subr.bf16.mxu0 0
    %232 = vmatpush1.bf16.msra.mxu0 0
    %233 = vmatprep.subr.bf16.mxu0 0
    %234 = vmatpush1.bf16.msra.mxu0 0
    %235 = vmatprep.subr.bf16.mxu0 0
    %236 = vmatpush1.bf16.msra.mxu0 0
    %237 = vmatprep.subr.bf16.mxu0 0
    %238 = vmatpush1.bf16.msra.mxu0 0
    %239 = vmatprep.subr.bf16.mxu0 0
    %240 = vmatpush1.bf16.msra.mxu0 0
    %241 = vmatprep.subr.bf16.mxu0 0
    %242 = vmatpush1.bf16.msra.mxu0 0
    %243 = vmatprep.subr.bf16.mxu0 0
    %244 = vmatpush1.bf16.msra.mxu0 0
    %245 = vmatprep.mubr.bf16.mxu0 0
    %246 = vmatmul.mubr.bf16.gmra.mrb[0].mxu0 %v206
    %v247 = vpop.f32.mrb[0].mxu0
    %v248 = vadd.f32 %v165, %v247
    %v249 = vpop.f32.mrb[0].mxu0
    %v250 = vpop.f32.mrb[0].mxu0
    %v251 = vadd.f32 %v168, %v250
    %v252 = vpop.f32.mrb[0].mxu0
    %253 = vmatprep.mubr.bf16.mxu0 0
    %254 = vmatmul.mubr.bf16.gmra.mrb[0].mxu0 %v208
    %v255 = vpop.f32.mrb[0].mxu0
    %v256 = vadd.f32 %v173, %v255
    %v257 = vpop.f32.mrb[0].mxu0
    %v258 = vpop.f32.mrb[0].mxu0
    %v259 = vadd.f32 %v176, %v258
    %v260 = vpop.f32.mrb[0].mxu0
    %261 = vdwg.mxu0
    %vm262 = vcmask 1046528
    %v263 = vrot.slane %v36, 1
    %v264 = vrot.slane %v53, 1
    %v265 = vsel %vm262, %v263, %v264
    %v266 = vrot.slane %v41, 1
    %v267 = vrot.slane %v69, 1
    %v268 = vsel %vm262, %v266, %v267
    %s269 = scalar_lea.vmem %s1, 72
    %v270 = vld [vmem:[%s269] sm:$0xf]
    %v271 = vld [vmem:[%s269 + $0x4] sm:$0xf]
    %v272 = vld [vmem:[%s269 + $0x8] sm:$0xf]
    %v273 = vld [vmem:[%s269 + $0xc] sm:$0xf]
    %v274 = vld [vmem:[%s269 + $0x10] sm:$0xf]
    %v275 = vld [vmem:[%s269 + $0x14] sm:$0xf]
    %v276 = vld [vmem:[%s269 + $0x18] sm:$0xf]
    %v277 = vld [vmem:[%s269 + $0x1c] sm:$0xf]
    %v278 = vld [vmem:[%s269 + $0x20] sm:$0xf]
    %v288 = vunpack.c.l.b16 %v270
    %v289 = vunpack.c.l.b16 %v271
    %v290 = vunpack.c.l.b16 %v272
    %v291 = vunpack.c.l.b16 %v273
    %v292 = vunpack.c.l.b16 %v274
    %v293 = vunpack.c.l.b16 %v275
    %v294 = vunpack.c.l.b16 %v276
    %v295 = vunpack.c.l.b16 %v277
    %v296 = vunpack.c.l.b16 %v278
    %v297 = vpack.c.b16 %v289, %v288
    %v298 = vpack.c.b16 %v291, %v290
    %v299 = vpack.c.b16 %v293, %v292
    %v300 = vpack.c.b16 %v295, %v294
    %v301 = vpack.c.b16 %v296, %v296
    %v307 = vsel %vm119, %v265, 0
    %v310 = vsel %vm119, %v268, 0
    %v313 = vsel %vm126, %v301, 0
    %315 = vmatprep.subr.bf16.mxu0 0
    %316 = vmatpush1.bf16.msra.mxu0 %v297
    %317 = vmatprep.subr.bf16.mxu0 0
    %318 = vmatpush1.bf16.msra.mxu0 %v298
    %319 = vmatprep.subr.bf16.mxu0 0
    %320 = vmatpush1.bf16.msra.mxu0 %v299
    %321 = vmatprep.subr.bf16.mxu0 0
    %322 = vmatpush1.bf16.msra.mxu0 %v300
    %323 = vmatprep.subr.bf16.mxu0 0
    %324 = vmatpush1.bf16.msra.mxu0 %v313
    %325 = vmatprep.subr.bf16.mxu0 0
    %326 = vmatpush1.bf16.msra.mxu0 0
    %327 = vmatprep.subr.bf16.mxu0 0
    %328 = vmatpush1.bf16.msra.mxu0 0
    %329 = vmatprep.subr.bf16.mxu0 0
    %330 = vmatpush1.bf16.msra.mxu0 0
    %331 = vmatprep.subr.bf16.mxu0 0
    %332 = vmatpush1.bf16.msra.mxu0 0
    %333 = vmatprep.subr.bf16.mxu0 0
    %334 = vmatpush1.bf16.msra.mxu0 0
    %335 = vmatprep.subr.bf16.mxu0 0
    %336 = vmatpush1.bf16.msra.mxu0 0
    %337 = vmatprep.subr.bf16.mxu0 0
    %338 = vmatpush1.bf16.msra.mxu0 0
    %339 = vmatprep.subr.bf16.mxu0 0
    %340 = vmatpush1.bf16.msra.mxu0 0
    %341 = vmatprep.subr.bf16.mxu0 0
    %342 = vmatpush1.bf16.msra.mxu0 0
    %343 = vmatprep.subr.bf16.mxu0 0
    %344 = vmatpush1.bf16.msra.mxu0 0
    %345 = vmatprep.subr.bf16.mxu0 0
    %346 = vmatpush1.bf16.msra.mxu0 0
    %347 = vmatprep.mubr.bf16.mxu0 0
    %348 = vmatmul.mubr.bf16.gmra.mrb[0].mxu0 %v307
    %v349 = vpop.f32.mrb[0].mxu0
    %v350 = vadd.f32 0.0, %v349
    %v351 = vpop.f32.mrb[0].mxu0
    %v352 = vpop.f32.mrb[0].mxu0
    %v353 = vadd.f32 0.0, %v352
    %v354 = vpop.f32.mrb[0].mxu0
    %355 = vmatprep.mubr.bf16.mxu0 0
    %356 = vmatmul.mubr.bf16.gmra.mrb[0].mxu0 %v310
    %v357 = vpop.f32.mrb[0].mxu0
    %v358 = vadd.f32 0.0, %v357
    %v359 = vpop.f32.mrb[0].mxu0
    %v360 = vpop.f32.mrb[0].mxu0
    %v361 = vadd.f32 0.0, %v360
    %v362 = vpop.f32.mrb[0].mxu0
    %363 = vdwg.mxu0
    %v364 = vadd.f32 %v248, %v350
    %v365 = vadd.f32 %v251, %v353
    %v366 = vadd.f32 %v256, %v358
    %v367 = vadd.f32 %v259, %v361
    %v368 = vld [vmem:[%s2] sm:$0x1]
    %v370 = vlaneseq
    %v371 = vshrl.u32 %v370, 7
    %v372 = vsub.s32 0, %v371
    %v373 = vrot.slane %v368, %v372
    %v375 = vadd.f32 %v364, %v373
    %v376 = vadd.f32 %v365, %v373
    %v377 = vadd.f32 %v366, %v373
    %v378 = vadd.f32 %v367, %v373
    %v379 = vmax.f32 %v375, 0.0
    %v380 = vmax.f32 %v376, 0.0
    %v381 = vmax.f32 %v377, 0.0
    %v382 = vmax.f32 %v378, 0.0
    %v383 = vld [vmem:[%s3] sm:$0x3]
    %vm384 = vcmask 261120
    %v386 = vsel %vm384, %v383, 0
    %388 = vmatprep.subr.mxu0 0.0
    %389 = vmatpush1.msra.mxu0 %v379
    %390 = vmatprep.subr.mxu0 0.0
    %391 = vmatpush1.msra.mxu0 %v380
    %392 = vmatprep.subr.mxu0 0.0
    %393 = vmatpush1.msra.mxu0 %v381
    %394 = vmatprep.subr.mxu0 0.0
    %395 = vmatpush1.msra.mxu0 %v382
    %396 = vmatprep.subr.mxu0 0.0
    %397 = vmatpush1.msra.mxu0 0.0
    %398 = vmatprep.subr.mxu0 0.0
    %399 = vmatpush1.msra.mxu0 0.0
    %400 = vmatprep.subr.mxu0 0.0
    %401 = vmatpush1.msra.mxu0 0.0
    %402 = vmatprep.subr.mxu0 0.0
    %403 = vmatpush1.msra.mxu0 0.0
    %404 = vmatprep.subr.mxu0 0.0
    %405 = vmatpush1.msra.mxu0 0.0
    %406 = vmatprep.subr.mxu0 0.0
    %407 = vmatpush1.msra.mxu0 0.0
    %408 = vmatprep.subr.mxu0 0.0
    %409 = vmatpush1.msra.mxu0 0.0
    %410 = vmatprep.subr.mxu0 0.0
    %411 = vmatpush1.msra.mxu0 0.0
    %412 = vmatprep.subr.mxu0 0.0
    %413 = vmatpush1.msra.mxu0 0.0
    %414 = vmatprep.subr.mxu0 0.0
    %415 = vmatpush1.msra.mxu0 0.0
    %416 = vmatprep.subr.mxu0 0.0
    %417 = vmatpush1.msra.mxu0 0.0
    %418 = vmatprep.subr.mxu0 0.0
    %419 = vmatpush1.msra.mxu0 0.0
    %420 = vmatprep.subr.mxu0 0.0
    %421 = vmatpush1.msra.mxu0 0.0
    %422 = vmatprep.subr.mxu0 0.0
    %423 = vmatpush1.msra.mxu0 0.0
    %424 = vmatprep.subr.mxu0 0.0
    %425 = vmatpush1.msra.mxu0 0.0
    %426 = vmatprep.subr.mxu0 0.0
    %427 = vmatpush1.msra.mxu0 0.0
    %428 = vmatprep.subr.mxu0 0.0
    %429 = vmatpush1.msra.mxu0 0.0
    %430 = vmatprep.subr.mxu0 0.0
    %431 = vmatpush1.msra.mxu0 0.0
    %432 = vmatprep.subr.mxu0 0.0
    %433 = vmatpush1.msra.mxu0 0.0
    %434 = vmatprep.subr.mxu0 0.0
    %435 = vmatpush1.msra.mxu0 0.0
    %436 = vmatprep.subr.mxu0 0.0
    %437 = vmatpush1.msra.mxu0 0.0
    %438 = vmatprep.subr.mxu0 0.0
    %439 = vmatpush1.msra.mxu0 0.0
    %440 = vmatprep.subr.mxu0 0.0
    %441 = vmatpush1.msra.mxu0 0.0
    %442 = vmatprep.subr.mxu0 0.0
    %443 = vmatpush1.msra.mxu0 0.0
    %444 = vmatprep.subr.mxu0 0.0
    %445 = vmatpush1.msra.mxu0 0.0
    %446 = vmatprep.subr.mxu0 0.0
    %447 = vmatpush1.msra.mxu0 0.0
    %448 = vmatprep.subr.mxu0 0.0
    %449 = vmatpush1.msra.mxu0 0.0
    %450 = vmatprep.subr.mxu0 0.0
    %451 = vmatpush1.msra.mxu0 0.0
    %452 = vmatprep.mubr.f32.mxu0 0.0
    %453 = vmatmul.mubr.f32.gmra.mrb[0].mxu0 %v386
    %v454 = vpop.f32.mrb[0].mxu0
    %v455 = vadd.f32 0.0, %v454
    %v456 = vpop.f32.mrb[0].mxu0
    %457 = vdwg.mxu0
    %v458 = vld [vmem:[%s4] sm:$0xff]
    %v459 = vld [vmem:[%s4 + $0x8] sm:$0xff]
    %v460 = vld [vmem:[%s4 + $0x10] sm:$0xff]
    %v461 = vld [vmem:[%s4 + $0x18] sm:$0xff]
    %v462 = vld [vmem:[%s4 + $0x20] sm:$0xff]
    %v463 = vld [vmem:[%s4 + $0x28] sm:$0xff]
    %v464 = vld [vmem:[%s4 + $0x30] sm:$0xff]
    %v465 = vld [vmem:[%s4 + $0x38] sm:$0xff]
    %v466 = vld [vmem:[%s4 + $0x40] sm:$0xff]
    %v467 = vld [vmem:[%s4 + $0x48] sm:$0xff]
    %v468 = vld [vmem:[%s4 + $0x50] sm:$0xff]
    %v469 = vld [vmem:[%s4 + $0x58] sm:$0xff]
    %v470 = vld [vmem:[%s4 + $0x60] sm:$0xff]
    %v471 = vld [vmem:[%s4 + $0x68] sm:$0xff]
    %v472 = vld [vmem:[%s4 + $0x70] sm:$0xff]
    %v473 = vld [vmem:[%s4 + $0x78] sm:$0xff]
    %v474 = vld [vmem:[%s5] sm:$0x1]
    %v476 = vlaneseq
    %v477 = vshrl.u32 %v476, 7
    %v478 = vsub.s32 0, %v477
    %v479 = vrot.slane %v474, %v478
    %481 = vmatprep.subr.mxu0 0.0
    %482 = vmatpush1.msra.mxu0 %v458
    %483 = vmatprep.subr.mxu0 0.0
    %484 = vmatpush1.msra.mxu0 %v459
    %485 = vmatprep.subr.mxu0 0.0
    %486 = vmatpush1.msra.mxu0 %v460
    %487 = vmatprep.subr.mxu0 0.0
    %488 = vmatpush1.msra.mxu0 %v461
    %489 = vmatprep.subr.mxu0 0.0
    %490 = vmatpush1.msra.mxu0 %v462
    %491 = vmatprep.subr.mxu0 0.0
    %492 = vmatpush1.msra.mxu0 %v463
    %493 = vmatprep.subr.mxu0 0.0
    %494 = vmatpush1.msra.mxu0 %v464
    %495 = vmatprep.subr.mxu0 0.0
    %496 = vmatpush1.msra.mxu0 %v465
    %497 = vmatprep.subr.mxu0 0.0
    %498 = vmatpush1.msra.mxu0 %v466
    %499 = vmatprep.subr.mxu0 0.0
    %500 = vmatpush1.msra.mxu0 %v467
    %501 = vmatprep.subr.mxu0 0.0
    %502 = vmatpush1.msra.mxu0 %v468
    %503 = vmatprep.subr.mxu0 0.0
    %504 = vmatpush1.msra.mxu0 %v469
    %505 = vmatprep.subr.mxu0 0.0
    %506 = vmatpush1.msra.mxu0 %v470
    %507 = vmatprep.subr.mxu0 0.0
    %508 = vmatpush1.msra.mxu0 %v471
    %509 = vmatprep.subr.mxu0 0.0
    %510 = vmatpush1.msra.mxu0 %v472
    %511 = vmatprep.subr.mxu0 0.0
    %512 = vmatpush1.msra.mxu0 %v473
    %513 = vmatprep.subr.mxu0 0.0
    %514 = vmatpush1.msra.mxu0 0.0
    %515 = vmatprep.subr.mxu0 0.0
    %516 = vmatpush1.msra.mxu0 0.0
    %517 = vmatprep.subr.mxu0 0.0
    %518 = vmatpush1.msra.mxu0 0.0
    %519 = vmatprep.subr.mxu0 0.0
    %520 = vmatpush1.msra.mxu0 0.0
    %521 = vmatprep.subr.mxu0 0.0
    %522 = vmatpush1.msra.mxu0 0.0
    %523 = vmatprep.subr.mxu0 0.0
    %524 = vmatpush1.msra.mxu0 0.0
    %525 = vmatprep.subr.mxu0 0.0
    %526 = vmatpush1.msra.mxu0 0.0
    %527 = vmatprep.subr.mxu0 0.0
    %528 = vmatpush1.msra.mxu0 0.0
    %529 = vmatprep.subr.mxu0 0.0
    %530 = vmatpush1.msra.mxu0 0.0
    %531 = vmatprep.subr.mxu0 0.0
    %532 = vmatpush1.msra.mxu0 0.0
    %533 = vmatprep.subr.mxu0 0.0
    %534 = vmatpush1.msra.mxu0 0.0
    %535 = vmatprep.subr.mxu0 0.0
    %536 = vmatpush1.msra.mxu0 0.0
    %537 = vmatprep.subr.mxu0 0.0
    %538 = vmatpush1.msra.mxu0 0.0
    %539 = vmatprep.subr.mxu0 0.0
    %540 = vmatpush1.msra.mxu0 0.0
    %541 = vmatprep.subr.mxu0 0.0
    %542 = vmatpush1.msra.mxu0 0.0
    %543 = vmatprep.subr.mxu0 0.0
    %544 = vmatpush1.msra.mxu0 0.0
    %545 = vmatprep.mubr.f32.mxu0 0.0
    %546 = vmatmul.mubr.f32.gmra.mrb[0].mxu0 %v455
    %v547 = vpop.f32.mrb[0].mxu0
    %v548 = vadd.f32 %v479, %v547
    %v549 = vpop.f32.mrb[0].mxu0
    %550 = vdwg.mxu0
    %vm551 = vcmask 74752
    %552 = vst.msk [vmem:[#allocation2] sm:$0x3] %vm551, %v548
    // Predicated region
    $region26: #{forward.1} parent=1 // pred_check
      _
    $region27: #{forward.1} parent=1 // pred_check_branch
      %554 = sbr.rel (0) target = $region29
    $region28: #{forward.1} parent=1 // pred_region
      %s556 = ssub.s32 32, 32
      %557 = vsyncadd [#allocation3], %s556
      %s559 = sshll.u32 [#allocation2], 4
      %s560 = int_to_ptr.vmem [resolvable:$true] %s559
      %562 = dma.vmem_to_hbm [thread:$0]  %s560, 32, %s6, [#allocation3]
    $region29: #{forward.1} parent=1 // pred_fallthru
      _
    // Predicated region
    $region30: #{forward.1} parent=1 // pred_check
      _
    $region31: #{forward.1} parent=1 // pred_check_branch
      %564 = sbr.rel (0) target = $region33
    $region32: #{forward.1} parent=1 // pred_region
      %565 = dma.done [#allocation3], 32
    $region33: #{forward.1} parent=1 // pred_fallthru
      _
    %566 = vsyncpa [#allocation3], 1

</llo_original>
